<compile_context>
chip_gen: v7x
topology: tpu7x:2x2x1
jax: 0.10.0
libtpu: 0.0.40
codegen_flags: <defaults>
</compile_context>

<pallas_src>
import jax
import jax.numpy as jnp
from jax.experimental import pallas as pl
from jax.experimental.pallas import tpu as pltpu

_LANE = 128


def _round_up(x, m):
    return (x + m - 1) // m * m


def _mlp_kernel(x_ref, w1_ref, b1_ref, w2_ref, b2_ref, w3_ref, b3_ref,
                w4_ref, b4_ref, o_ref):
    # Full forward pass for one batch tile; batch on lanes, features on sublanes.
    cdt = x_ref.dtype  # MXU operand dtype (f32 by default; bf16 opt-in for v6e/v7x)
    x = x_ref[...]                                                        # (13, Tb)

    h = jnp.dot(w1_ref[...], x, preferred_element_type=jnp.float32) + b1_ref[...]
    h = jnp.tanh(h).astype(cdt)                                           # (32, Tb)
    h = jnp.dot(w2_ref[...], h, preferred_element_type=jnp.float32) + b2_ref[...]
    h = jnp.tanh(h).astype(cdt)                                           # (32, Tb)
    h = jnp.dot(w3_ref[...], h, preferred_element_type=jnp.float32) + b3_ref[...]
    h = jnp.tanh(h).astype(cdt)                                           # (32, Tb)
    y = jnp.dot(w4_ref[...], h, preferred_element_type=jnp.float32) + b4_ref[...]

    o_ref[...] = y.astype(o_ref.dtype)                                    # (1, Tb) lane-dense


def cost_predictor_forward(x, params, *, tile_b=1024, mxu_dtype=jnp.float32):
    """x: (B, 13) float32. Returns (B, 1) float32.

    tile_b: batch-tile width (lanes); sweep 512-2048 for large B.
    mxu_dtype: jnp.bfloat16 halves x/W DMA and uses the native MXU datapath on
               v6e/v7x (accumulation stays f32); keep f32 for bit-accurate results.
    """
    B, D = x.shape
    assert D == 13

    (w1, b1), (w2, b2), (w3, b3), (w4, b4) = params

    # --- choose padded batch and tile (lane-dense: multiples of 128) -------------
    b_pad = _round_up(max(B, _LANE), _LANE)
    tile_b = min(_round_up(int(tile_b), _LANE), b_pad)
    # Prefer >= 2 grid steps so v7x megacore sharding has work for both TCs.
    if b_pad > _LANE and b_pad // tile_b < 2:
        tile_b = _round_up(b_pad // 2, _LANE)
    b_pad = _round_up(b_pad, tile_b)
    grid = (b_pad // tile_b,)

    # --- host-side layout: batch on lanes, zero-pad batch -----------------------
    xt = jnp.pad(x.T, ((0, 0), (0, b_pad - B))).astype(mxu_dtype)         # (13, b_pad)
    w1c, w2c, w3c, w4c = (w.astype(mxu_dtype) for w in (w1, w2, w3, w4))
    # Biases stay f32: added after the f32 accumulation, tanh stays f32 (v5e-safe).

    def rep(a):
        # Parameters: full block, same block every grid step (stay VMEM-resident).
        return pl.BlockSpec(a.shape, lambda i: (0, 0))

    out = pl.pallas_call(
        _mlp_kernel,
        out_shape=jax.ShapeDtypeStruct((1, b_pad), jnp.float32),
        grid_spec=pltpu.PrefetchScalarGridSpec(
            num_scalar_prefetch=0,
            grid=grid,
            in_specs=[
                pl.BlockSpec((13, tile_b), lambda i: (0, i)),   # x tile (lane-dense)
                rep(w1c), rep(b1),
                rep(w2c), rep(b2),
                rep(w3c), rep(b3),
                rep(w4c), rep(b4),
            ],
            out_specs=pl.BlockSpec((1, tile_b), lambda i: (0, i)),
        ),
        compiler_params=pltpu.CompilerParams(
            dimension_semantics=("parallel",)),
    )(xt, w1c, b1, w2c, b2, w3c, b3, w4c, b4)

    return out[:, :B].T                                                   # (B, 1)


def init_params(key):
    """PyTorch Linear default init (U[-1/sqrt(fan_in), +]); weights stored (out, in)."""
    dims = [(13, 32), (32, 32), (32, 32), (32, 1)]
    params = []
    for i, (fan_in, fan_out) in enumerate(dims):
        kw, kb = jax.random.split(jax.random.fold_in(key, i))
        bound = 1.0 / jnp.sqrt(jnp.float32(fan_in))
        w = jax.random.uniform(kw, (fan_out, fan_in), jnp.float32, -bound, bound)
        b = jax.random.uniform(kb, (fan_out, 1), jnp.float32, -bound, bound)
        params.append((w, b))
    return params


def reference_forward(x, params):
    (w1, b1), (w2, b2), (w3, b3), (w4, b4) = params
    h = jnp.tanh(x @ w1.T + b1.T)
    h = jnp.tanh(h @ w2.T + b2.T)
    h = jnp.tanh(h @ w3.T + b3.T)
    return h @ w4.T + b4.T


if __name__ == "__main__":
    key = jax.random.PRNGKey(0)
    kx, kx2, kp = jax.random.split(key, 3)
    params = init_params(kp)

    # Small batch (single tile, padded to 128 lanes).
    B = 8
    x = jax.random.normal(kx, (B, 13), jnp.float32)
    out = jax.block_until_ready(cost_predictor_forward(x, params))
    ref = reference_forward(x, params)
    assert out.shape == (B, 1)
    assert jnp.allclose(out, ref, atol=1e-5, rtol=1e-4), "mismatch vs pure-JAX reference (B=8)"

    # Ragged batch exercising padding + multi-step grid (>=2 tiles for megacore).
    B2 = 300
    x2 = jax.random.normal(kx2, (B2, 13), jnp.float32)
    out2 = jax.block_until_ready(cost_predictor_forward(x2, params, tile_b=1024))
    ref2 = reference_forward(x2, params)
    assert out2.shape == (B2, 1)
    assert jnp.allclose(out2, ref2, atol=1e-5, rtol=1e-4), "mismatch vs pure-JAX reference (B=300)"

    print("KERNEL_OK")
</pallas_src>

<mosaic_0001>
module attributes {stable_mosaic.version = 11 : i64} {
  func.func @_mlp_kernel(%arg0: i32, %arg1: memref<13x128xf32, #tpu.memory_space<vmem>>, %arg2: memref<32x13xf32, #tpu.memory_space<vmem>>, %arg3: memref<32x1xf32, #tpu.memory_space<vmem>>, %arg4: memref<32x32xf32, #tpu.memory_space<vmem>>, %arg5: memref<32x1xf32, #tpu.memory_space<vmem>>, %arg6: memref<32x32xf32, #tpu.memory_space<vmem>>, %arg7: memref<32x1xf32, #tpu.memory_space<vmem>>, %arg8: memref<1x32xf32, #tpu.memory_space<vmem>>, %arg9: memref<1x1xf32, #tpu.memory_space<vmem>>, %arg10: memref<1x128xf32, #tpu.memory_space<vmem>>) attributes {dimension_semantics = [#tpu.dimension_semantics<parallel>], iteration_bounds = array<i64: 1>, scalar_prefetch = 0 : i64, scratch_operands = 0 : i64, tpu.core_type = #tpu.core_type<tc>, window_params = [{transform_indices = @transform_0, window_bounds = array<i64: 13, 128>}, {pipeline_mode = #tpu.pipeline_mode<synchronous>, transform_indices = @transform_1, window_bounds = array<i64: 32, 13>}, {pipeline_mode = #tpu.pipeline_mode<synchronous>, transform_indices = @transform_2, window_bounds = array<i64: 32, 1>}, {pipeline_mode = #tpu.pipeline_mode<synchronous>, transform_indices = @transform_3, window_bounds = array<i64: 32, 32>}, {pipeline_mode = #tpu.pipeline_mode<synchronous>, transform_indices = @transform_4, window_bounds = array<i64: 32, 1>}, {pipeline_mode = #tpu.pipeline_mode<synchronous>, transform_indices = @transform_5, window_bounds = array<i64: 32, 32>}, {pipeline_mode = #tpu.pipeline_mode<synchronous>, transform_indices = @transform_6, window_bounds = array<i64: 32, 1>}, {pipeline_mode = #tpu.pipeline_mode<synchronous>, transform_indices = @transform_7, window_bounds = array<i64: 1, 32>}, {pipeline_mode = #tpu.pipeline_mode<synchronous>, transform_indices = @transform_8, window_bounds = array<i64: 1, 1>}, {transform_indices = @transform_9, window_bounds = array<i64: 1, 128>}]} {
    %c0 = arith.constant 0 : index
    %c0_0 = arith.constant 0 : index
    %0 = vector.load %arg1[%c0, %c0_0] : memref<13x128xf32, #tpu.memory_space<vmem>>, vector<13x128xf32>
    %c0_1 = arith.constant 0 : index
    %c0_2 = arith.constant 0 : index
    %1 = vector.load %arg2[%c0_1, %c0_2] : memref<32x13xf32, #tpu.memory_space<vmem>>, vector<32x13xf32>
    %cst = arith.constant dense<0.000000e+00> : vector<32x128xf32>
    %2 = tpu.matmul %1, %0, %cst {dimension_numbers = #tpu.dot_dimension_numbers<[1], [0], [0], [1], [0, 0, 1, 1], [], []>} : vector<32x13xf32>, vector<13x128xf32>, vector<32x128xf32> -> vector<32x128xf32>
    %c0_3 = arith.constant 0 : index
    %c0_4 = arith.constant 0 : index
    %3 = vector.load %arg3[%c0_3, %c0_4] : memref<32x1xf32, #tpu.memory_space<vmem>>, vector<32x1xf32>
    %4 = vector.broadcast %3 : vector<32x1xf32> to vector<32x128xf32>
    %5 = arith.addf %2, %4 : vector<32x128xf32>
    %6 = math.tanh %5 : vector<32x128xf32>
    %c0_5 = arith.constant 0 : index
    %c0_6 = arith.constant 0 : index
    %7 = vector.load %arg4[%c0_5, %c0_6] : memref<32x32xf32, #tpu.memory_space<vmem>>, vector<32x32xf32>
    %cst_7 = arith.constant dense<0.000000e+00> : vector<32x128xf32>
    %8 = tpu.matmul %7, %6, %cst_7 {dimension_numbers = #tpu.dot_dimension_numbers<[1], [0], [0], [1], [0, 0, 1, 1], [], []>} : vector<32x32xf32>, vector<32x128xf32>, vector<32x128xf32> -> vector<32x128xf32>
    %c0_8 = arith.constant 0 : index
    %c0_9 = arith.constant 0 : index
    %9 = vector.load %arg5[%c0_8, %c0_9] : memref<32x1xf32, #tpu.memory_space<vmem>>, vector<32x1xf32>
    %10 = vector.broadcast %9 : vector<32x1xf32> to vector<32x128xf32>
    %11 = arith.addf %8, %10 : vector<32x128xf32>
    %12 = math.tanh %11 : vector<32x128xf32>
    %c0_10 = arith.constant 0 : index
    %c0_11 = arith.constant 0 : index
    %13 = vector.load %arg6[%c0_10, %c0_11] : memref<32x32xf32, #tpu.memory_space<vmem>>, vector<32x32xf32>
    %cst_12 = arith.constant dense<0.000000e+00> : vector<32x128xf32>
    %14 = tpu.matmul %13, %12, %cst_12 {dimension_numbers = #tpu.dot_dimension_numbers<[1], [0], [0], [1], [0, 0, 1, 1], [], []>} : vector<32x32xf32>, vector<32x128xf32>, vector<32x128xf32> -> vector<32x128xf32>
    %c0_13 = arith.constant 0 : index
    %c0_14 = arith.constant 0 : index
    %15 = vector.load %arg7[%c0_13, %c0_14] : memref<32x1xf32, #tpu.memory_space<vmem>>, vector<32x1xf32>
    %16 = vector.broadcast %15 : vector<32x1xf32> to vector<32x128xf32>
    %17 = arith.addf %14, %16 : vector<32x128xf32>
    %18 = math.tanh %17 : vector<32x128xf32>
    %c0_15 = arith.constant 0 : index
    %c0_16 = arith.constant 0 : index
    %19 = vector.load %arg8[%c0_15, %c0_16] : memref<1x32xf32, #tpu.memory_space<vmem>>, vector<1x32xf32>
    %cst_17 = arith.constant dense<0.000000e+00> : vector<1x128xf32>
    %20 = tpu.matmul %19, %18, %cst_17 {dimension_numbers = #tpu.dot_dimension_numbers<[1], [0], [0], [1], [0, 0, 1, 1], [], []>} : vector<1x32xf32>, vector<32x128xf32>, vector<1x128xf32> -> vector<1x128xf32>
    %c0_18 = arith.constant 0 : index
    %c0_19 = arith.constant 0 : index
    %21 = vector.load %arg9[%c0_18, %c0_19] : memref<1x1xf32, #tpu.memory_space<vmem>>, vector<1x1xf32>
    %22 = vector.broadcast %21 : vector<1x1xf32> to vector<1x128xf32>
    %23 = arith.addf %20, %22 : vector<1x128xf32>
    %c0_20 = arith.constant 0 : index
    %c0_21 = arith.constant 0 : index
    %24 = vector.load %arg10[%c0_20, %c0_21] : memref<1x128xf32, #tpu.memory_space<vmem>>, vector<1x128xf32>
    tpu.vector_store %arg10[%c0_20, %c0_21], %23 {strides = array<i32>} : memref<1x128xf32, #tpu.memory_space<vmem>>, vector<1x128xf32>,
    return
  }
  func.func @transform_0(%arg0: i32) -> (i32, i32) {
    %c0_i32 = arith.constant 0 : i32
    %c0_i32_0 = arith.constant 0 : i32
    return %c0_i32, %arg0 : i32, i32
  }
  func.func @transform_1(%arg0: i32) -> (i32, i32) {
    %c0_i32 = arith.constant 0 : i32
    %c0_i32_0 = arith.constant 0 : i32
    %c0_i32_1 = arith.constant 0 : i32
    return %c0_i32, %c0_i32_0 : i32, i32
  }
  func.func @transform_2(%arg0: i32) -> (i32, i32) {
    %c0_i32 = arith.constant 0 : i32
    %c0_i32_0 = arith.constant 0 : i32
    %c0_i32_1 = arith.constant 0 : i32
    return %c0_i32, %c0_i32_0 : i32, i32
  }
  func.func @transform_3(%arg0: i32) -> (i32, i32) {
    %c0_i32 = arith.constant 0 : i32
    %c0_i32_0 = arith.constant 0 : i32
    %c0_i32_1 = arith.constant 0 : i32
    return %c0_i32, %c0_i32_0 : i32, i32
  }
  func.func @transform_4(%arg0: i32) -> (i32, i32) {
    %c0_i32 = arith.constant 0 : i32
    %c0_i32_0 = arith.constant 0 : i32
    %c0_i32_1 = arith.constant 0 : i32
    return %c0_i32, %c0_i32_0 : i32, i32
  }
  func.func @transform_5(%arg0: i32) -> (i32, i32) {
    %c0_i32 = arith.constant 0 : i32
    %c0_i32_0 = arith.constant 0 : i32
    %c0_i32_1 = arith.constant 0 : i32
    return %c0_i32, %c0_i32_0 : i32, i32
  }
  func.func @transform_6(%arg0: i32) -> (i32, i32) {
    %c0_i32 = arith.constant 0 : i32
    %c0_i32_0 = arith.constant 0 : i32
    %c0_i32_1 = arith.constant 0 : i32
    return %c0_i32, %c0_i32_0 : i32, i32
  }
  func.func @transform_7(%arg0: i32) -> (i32, i32) {
    %c0_i32 = arith.constant 0 : i32
    %c0_i32_0 = arith.constant 0 : i32
    %c0_i32_1 = arith.constant 0 : i32
    return %c0_i32, %c0_i32_0 : i32, i32
  }
  func.func @transform_8(%arg0: i32) -> (i32, i32) {
    %c0_i32 = arith.constant 0 : i32
    %c0_i32_0 = arith.constant 0 : i32
    %c0_i32_1 = arith.constant 0 : i32
    return %c0_i32, %c0_i32_0 : i32, i32
  }
  func.func @transform_9(%arg0: i32) -> (i32, i32) {
    %c0_i32 = arith.constant 0 : i32
    %c0_i32_0 = arith.constant 0 : i32
    return %c0_i32, %arg0 : i32, i32
  }
}

</mosaic_0001>

<llo_original>
// kernel: tpu_custom_call.1
$region0: #{tpu_custom_call.1}
  #allocation0 [shape = 'u32[]', space=smem, size = 0x4, offset = 0x4, fixed_abs, tag = 'smem constant byte address 0x4 - core index']
  #allocation1 [shape = 'u32[144,128]{1,0:T(1,128)}', space=vmem, size = 0x12000, scoped, tag = 'internal scratch']
  #allocation2 [shape = 'f32[1,1]{1,0:T(1,128)S(1)}', space=vmem, size = 0x200, scoped, tag = 'scoped memory for tpu_custom_call.1']
  %s0 = inlined_call_operand.vmem [shape: f32[13,128], index: 0, kind: input, shape index: {}]
  %s1 = inlined_call_operand.vmem [shape: f32[32,13], index: 1, kind: input, shape index: {}]
  %s2 = inlined_call_operand.vmem [shape: f32[32,1], index: 2, kind: input, shape index: {}]
  %s3 = inlined_call_operand.vmem [shape: f32[32,32], index: 3, kind: input, shape index: {}]
  %s4 = inlined_call_operand.vmem [shape: f32[32,1], index: 4, kind: input, shape index: {}]
  %s5 = inlined_call_operand.vmem [shape: f32[32,32], index: 5, kind: input, shape index: {}]
  %s6 = inlined_call_operand.vmem [shape: f32[32,1], index: 6, kind: input, shape index: {}]
  %s7 = inlined_call_operand.vmem [shape: f32[1,32], index: 7, kind: input, shape index: {}]
  %s8 = inlined_call_operand.<no memory space> [shape: f32[1,1], index: 8, kind: input, shape index: {}]
  %s9 = inlined_call_operand.hbm [shape: f32[1,128], index: 9, kind: output, shape index: {}]
  %s10 = sld [smem:[#allocation0]]
  $region46: #{tpu_custom_call.1} parent=0
    _
  %s12 = ssub.s32 1, %s10
  %s13 = scalar_select 0, %s12, %s10
  %v14 = vstv %s8
  %15 = vst [vmem:[#allocation2] sm:$0x1] %v14
  $region1: #{tpu_custom_call.1} parent=0
    #allocation3 [shape = 'u8[512]{0}', space=vmem, size = 0x400, scoped, tag = 'output window, operand 0, single buffered']
    #allocation4 [shape = 's32[1]{0}', space=sflag, size = 0x4, scoped, tag = 'scoped memory for tpu_custom_call.1']
    %16 = vsyncpa [#allocation4], 0
    // Predicated region
    $region2: #{tpu_custom_call.1} parent=1 // pred_check
      _
    $region3: #{tpu_custom_call.1} parent=1 // pred_check_branch
      %18 = sbr.rel (0) target = $region5
    $region4: #{tpu_custom_call.1} parent=1 // pred_region
      _
    $region5: #{tpu_custom_call.1} parent=1 // pred_fallthru
      _
    // Predicated region
    $region6: #{tpu_custom_call.1} parent=1 // pred_check
      _
    $region7: #{tpu_custom_call.1} parent=1 // pred_check_branch
      %20 = sbr.rel (0) target = $region9
    $region8: #{tpu_custom_call.1} parent=1 // pred_region
      _
    $region9: #{tpu_custom_call.1} parent=1 // pred_fallthru
      _
    // Predicated region
    $region10: #{tpu_custom_call.1} parent=1 // pred_check
      _
    $region11: #{tpu_custom_call.1} parent=1 // pred_check_branch
      %22 = sbr.rel (0) target = $region13
    $region12: #{tpu_custom_call.1} parent=1 // pred_region
      _
    $region13: #{tpu_custom_call.1} parent=1 // pred_fallthru
      _
    // Predicated region
    $region14: #{tpu_custom_call.1} parent=1 // pred_check
      _
    $region15: #{tpu_custom_call.1} parent=1 // pred_check_branch
      %24 = sbr.rel (0) target = $region17
    $region16: #{tpu_custom_call.1} parent=1 // pred_region
      _
    $region17: #{tpu_custom_call.1} parent=1 // pred_fallthru
      _
    // Predicated region
    $region18: #{tpu_custom_call.1} parent=1 // pred_check
      _
    $region19: #{tpu_custom_call.1} parent=1 // pred_check_branch
      %26 = sbr.rel (0) target = $region21
    $region20: #{tpu_custom_call.1} parent=1 // pred_region
      _
    $region21: #{tpu_custom_call.1} parent=1 // pred_fallthru
      _
    // Predicated region
    $region22: #{tpu_custom_call.1} parent=1 // pred_check
      _
    $region23: #{tpu_custom_call.1} parent=1 // pred_check_branch
      %28 = sbr.rel (0) target = $region25
    $region24: #{tpu_custom_call.1} parent=1 // pred_region
      _
    $region25: #{tpu_custom_call.1} parent=1 // pred_fallthru
      _
    // Predicated region
    $region26: #{tpu_custom_call.1} parent=1 // pred_check
      _
    $region27: #{tpu_custom_call.1} parent=1 // pred_check_branch
      %30 = sbr.rel (0) target = $region29
    $region28: #{tpu_custom_call.1} parent=1 // pred_region
      _
    $region29: #{tpu_custom_call.1} parent=1 // pred_fallthru
      _
    // Predicated region
    $region30: #{tpu_custom_call.1} parent=1 // pred_check
      _
    $region31: #{tpu_custom_call.1} parent=1 // pred_check_branch
      %32 = sbr.rel (0) target = $region33
    $region32: #{tpu_custom_call.1} parent=1 // pred_region
      _
    $region33: #{tpu_custom_call.1} parent=1 // pred_fallthru
      _
    // Predicated region
    $region34: #{tpu_custom_call.1} parent=1 // pred_check
      _
    $region35: #{tpu_custom_call.1} parent=1 // pred_check_branch
      %34 = sbr.rel (0) target = $region37
    $region36: #{tpu_custom_call.1} parent=1 // pred_region
      _
    $region37: #{tpu_custom_call.1} parent=1 // pred_fallthru
      _
    %v35 = vld [vmem:[%s0] sm:$0xff]
    %v36 = vld [vmem:[%s0 + $0x8] sm:$0x1f]
    %v37 = vld [vmem:[%s1] sm:$0xff]
    %v38 = vld [vmem:[%s1 + $0x8] sm:$0xff]
    %v39 = vld [vmem:[%s1 + $0x10] sm:$0xff]
    %v40 = vld [vmem:[%s1 + $0x18] sm:$0xff]
    %v41 = vld [vmem:[%s2] sm:$0xff]
    %v42 = vld [vmem:[%s2 + $0x8] sm:$0xff]
    %v43 = vld [vmem:[%s2 + $0x10] sm:$0xff]
    %v44 = vld [vmem:[%s2 + $0x18] sm:$0xff]
    %46 = vset.pattern.permute.xlu0 0
    %47 = vperm.xlu0 %46, %v41
    %v48 = vpop.permute.xlu0 %47
    %51 = vset.pattern.permute.xlu0 0
    %52 = vperm.xlu0 %51, %v42
    %v53 = vpop.permute.xlu0 %52
    %56 = vset.pattern.permute.xlu0 0
    %57 = vperm.xlu0 %56, %v43
    %v58 = vpop.permute.xlu0 %57
    %61 = vset.pattern.permute.xlu0 0
    %62 = vperm.xlu0 %61, %v44
    %v63 = vpop.permute.xlu0 %62
    %vm65 = vcmask 105472
    %v67 = vsel %vm65, %v37, 0
    %v70 = vsel %vm65, %v38, 0
    %v73 = vsel %vm65, %v39, 0
    %v76 = vsel %vm65, %v40, 0
    %vm78 = vcmask 1044480
    %v80 = vsel %vm78, %v36, 0
    %82 = vmatprep.subr.mxu0 0.0
    %83 = vmatpush1.msra.mxu0 %v35
    %84 = vmatprep.subr.mxu0 0.0
    %85 = vmatpush1.msra.mxu0 %v80
    %86 = vmatprep.subr.mxu0 0.0
    %87 = vmatpush1.msra.mxu0 0.0
    %88 = vmatprep.subr.mxu0 0.0
    %89 = vmatpush1.msra.mxu0 0.0
    %90 = vmatprep.subr.mxu0 0.0
    %91 = vmatpush1.msra.mxu0 0.0
    %92 = vmatprep.subr.mxu0 0.0
    %93 = vmatpush1.msra.mxu0 0.0
    %94 = vmatprep.subr.mxu0 0.0
    %95 = vmatpush1.msra.mxu0 0.0
    %96 = vmatprep.subr.mxu0 0.0
    %97 = vmatpush1.msra.mxu0 0.0
    %98 = vmatprep.subr.mxu0 0.0
    %99 = vmatpush1.msra.mxu0 0.0
    %100 = vmatprep.subr.mxu0 0.0
    %101 = vmatpush1.msra.mxu0 0.0
    %102 = vmatprep.subr.mxu0 0.0
    %103 = vmatpush1.msra.mxu0 0.0
    %104 = vmatprep.subr.mxu0 0.0
    %105 = vmatpush1.msra.mxu0 0.0
    %106 = vmatprep.subr.mxu0 0.0
    %107 = vmatpush1.msra.mxu0 0.0
    %108 = vmatprep.subr.mxu0 0.0
    %109 = vmatpush1.msra.mxu0 0.0
    %110 = vmatprep.subr.mxu0 0.0
    %111 = vmatpush1.msra.mxu0 0.0
    %112 = vmatprep.subr.mxu0 0.0
    %113 = vmatpush1.msra.mxu0 0.0
    %114 = vmatprep.subr.mxu0 0.0
    %115 = vmatpush1.msra.mxu0 0.0
    %116 = vmatprep.subr.mxu0 0.0
    %117 = vmatpush1.msra.mxu0 0.0
    %118 = vmatprep.subr.mxu0 0.0
    %119 = vmatpush1.msra.mxu0 0.0
    %120 = vmatprep.subr.mxu0 0.0
    %121 = vmatpush1.msra.mxu0 0.0
    %122 = vmatprep.subr.mxu0 0.0
    %123 = vmatpush1.msra.mxu0 0.0
    %124 = vmatprep.subr.mxu0 0.0
    %125 = vmatpush1.msra.mxu0 0.0
    %126 = vmatprep.subr.mxu0 0.0
    %127 = vmatpush1.msra.mxu0 0.0
    %128 = vmatprep.subr.mxu0 0.0
    %129 = vmatpush1.msra.mxu0 0.0
    %130 = vmatprep.subr.mxu0 0.0
    %131 = vmatpush1.msra.mxu0 0.0
    %132 = vmatprep.subr.mxu0 0.0
    %133 = vmatpush1.msra.mxu0 0.0
    %134 = vmatprep.subr.mxu0 0.0
    %135 = vmatpush1.msra.mxu0 0.0
    %136 = vmatprep.subr.mxu0 0.0
    %137 = vmatpush1.msra.mxu0 0.0
    %138 = vmatprep.subr.mxu0 0.0
    %139 = vmatpush1.msra.mxu0 0.0
    %140 = vmatprep.subr.mxu0 0.0
    %141 = vmatpush1.msra.mxu0 0.0
    %142 = vmatprep.subr.mxu0 0.0
    %143 = vmatpush1.msra.mxu0 0.0
    %144 = vmatprep.subr.mxu0 0.0
    %145 = vmatpush1.msra.mxu0 0.0
    %146 = vmatprep.mubr.f32.mxu0 0.0
    %147 = vmatmul.mubr.f32.gmra.mrb[0].mxu0 %v67
    %v148 = vpop.f32.mrb[0].mxu0
    %v149 = vadd.f32 %v48, %v148
    %v150 = vpop.f32.mrb[0].mxu0
    %151 = vmatprep.mubr.f32.mxu0 0.0
    %152 = vmatmul.mubr.f32.gmra.mrb[0].mxu0 %v70
    %v153 = vpop.f32.mrb[0].mxu0
    %v154 = vadd.f32 %v53, %v153
    %v155 = vpop.f32.mrb[0].mxu0
    %156 = vmatprep.mubr.f32.mxu0 0.0
    %157 = vmatmul.mubr.f32.gmra.mrb[0].mxu0 %v73
    %v158 = vpop.f32.mrb[0].mxu0
    %v159 = vadd.f32 %v58, %v158
    %v160 = vpop.f32.mrb[0].mxu0
    %161 = vmatprep.mubr.f32.mxu0 0.0
    %162 = vmatmul.mubr.f32.gmra.mrb[0].mxu0 %v76
    %v163 = vpop.f32.mrb[0].mxu0
    %v164 = vadd.f32 %v63, %v163
    %v165 = vpop.f32.mrb[0].mxu0
    %166 = vdwg.mxu0
    %v167 = vtanh.pop %v149
    %v168 = vtanh.pop %v154
    %v169 = vtanh.pop %v159
    %v170 = vtanh.pop %v164
    %v171 = vld [vmem:[%s3] sm:$0xff]
    %v172 = vld [vmem:[%s3 + $0x8] sm:$0xff]
    %v173 = vld [vmem:[%s3 + $0x10] sm:$0xff]
    %v174 = vld [vmem:[%s3 + $0x18] sm:$0xff]
    %v175 = vld [vmem:[%s4] sm:$0xff]
    %v176 = vld [vmem:[%s4 + $0x8] sm:$0xff]
    %v177 = vld [vmem:[%s4 + $0x10] sm:$0xff]
    %v178 = vld [vmem:[%s4 + $0x18] sm:$0xff]
    %180 = vset.pattern.permute.xlu0 0
    %181 = vperm.xlu0 %180, %v175
    %v182 = vpop.permute.xlu0 %181
    %185 = vset.pattern.permute.xlu0 0
    %186 = vperm.xlu0 %185, %v176
    %v187 = vpop.permute.xlu0 %186
    %190 = vset.pattern.permute.xlu0 0
    %191 = vperm.xlu0 %190, %v177
    %v192 = vpop.permute.xlu0 %191
    %195 = vset.pattern.permute.xlu0 0
    %196 = vperm.xlu0 %195, %v178
    %v197 = vpop.permute.xlu0 %196
    %vm199 = vcmask 261120
    %v201 = vsel %vm199, %v171, 0
    %v204 = vsel %vm199, %v172, 0
    %v207 = vsel %vm199, %v173, 0
    %v210 = vsel %vm199, %v174, 0
    %212 = vmatprep.subr.mxu0 0.0
    %213 = vmatpush1.msra.mxu0 %v167
    %214 = vmatprep.subr.mxu0 0.0
    %215 = vmatpush1.msra.mxu0 %v168
    %216 = vmatprep.subr.mxu0 0.0
    %217 = vmatpush1.msra.mxu0 %v169
    %218 = vmatprep.subr.mxu0 0.0
    %219 = vmatpush1.msra.mxu0 %v170
    %220 = vmatprep.subr.mxu0 0.0
    %221 = vmatpush1.msra.mxu0 0.0
    %222 = vmatprep.subr.mxu0 0.0
    %223 = vmatpush1.msra.mxu0 0.0
    %224 = vmatprep.subr.mxu0 0.0
    %225 = vmatpush1.msra.mxu0 0.0
    %226 = vmatprep.subr.mxu0 0.0
    %227 = vmatpush1.msra.mxu0 0.0
    %228 = vmatprep.subr.mxu0 0.0
    %229 = vmatpush1.msra.mxu0 0.0
    %230 = vmatprep.subr.mxu0 0.0
    %231 = vmatpush1.msra.mxu0 0.0
    %232 = vmatprep.subr.mxu0 0.0
    %233 = vmatpush1.msra.mxu0 0.0
    %234 = vmatprep.subr.mxu0 0.0
    %235 = vmatpush1.msra.mxu0 0.0
    %236 = vmatprep.subr.mxu0 0.0
    %237 = vmatpush1.msra.mxu0 0.0
    %238 = vmatprep.subr.mxu0 0.0
    %239 = vmatpush1.msra.mxu0 0.0
    %240 = vmatprep.subr.mxu0 0.0
    %241 = vmatpush1.msra.mxu0 0.0
    %242 = vmatprep.subr.mxu0 0.0
    %243 = vmatpush1.msra.mxu0 0.0
    %244 = vmatprep.subr.mxu0 0.0
    %245 = vmatpush1.msra.mxu0 0.0
    %246 = vmatprep.subr.mxu0 0.0
    %247 = vmatpush1.msra.mxu0 0.0
    %248 = vmatprep.subr.mxu0 0.0
    %249 = vmatpush1.msra.mxu0 0.0
    %250 = vmatprep.subr.mxu0 0.0
    %251 = vmatpush1.msra.mxu0 0.0
    %252 = vmatprep.subr.mxu0 0.0
    %253 = vmatpush1.msra.mxu0 0.0
    %254 = vmatprep.subr.mxu0 0.0
    %255 = vmatpush1.msra.mxu0 0.0
    %256 = vmatprep.subr.mxu0 0.0
    %257 = vmatpush1.msra.mxu0 0.0
    %258 = vmatprep.subr.mxu0 0.0
    %259 = vmatpush1.msra.mxu0 0.0
    %260 = vmatprep.subr.mxu0 0.0
    %261 = vmatpush1.msra.mxu0 0.0
    %262 = vmatprep.subr.mxu0 0.0
    %263 = vmatpush1.msra.mxu0 0.0
    %264 = vmatprep.subr.mxu0 0.0
    %265 = vmatpush1.msra.mxu0 0.0
    %266 = vmatprep.subr.mxu0 0.0
    %267 = vmatpush1.msra.mxu0 0.0
    %268 = vmatprep.subr.mxu0 0.0
    %269 = vmatpush1.msra.mxu0 0.0
    %270 = vmatprep.subr.mxu0 0.0
    %271 = vmatpush1.msra.mxu0 0.0
    %272 = vmatprep.subr.mxu0 0.0
    %273 = vmatpush1.msra.mxu0 0.0
    %274 = vmatprep.subr.mxu0 0.0
    %275 = vmatpush1.msra.mxu0 0.0
    %276 = vmatprep.mubr.f32.mxu0 0.0
    %277 = vmatmul.mubr.f32.gmra.mrb[0].mxu0 %v201
    %v278 = vpop.f32.mrb[0].mxu0
    %v279 = vadd.f32 %v182, %v278
    %v280 = vpop.f32.mrb[0].mxu0
    %281 = vmatprep.mubr.f32.mxu0 0.0
    %282 = vmatmul.mubr.f32.gmra.mrb[0].mxu0 %v204
    %v283 = vpop.f32.mrb[0].mxu0
    %v284 = vadd.f32 %v187, %v283
    %v285 = vpop.f32.mrb[0].mxu0
    %286 = vmatprep.mubr.f32.mxu0 0.0
    %287 = vmatmul.mubr.f32.gmra.mrb[0].mxu0 %v207
    %v288 = vpop.f32.mrb[0].mxu0
    %v289 = vadd.f32 %v192, %v288
    %v290 = vpop.f32.mrb[0].mxu0
    %291 = vmatprep.mubr.f32.mxu0 0.0
    %292 = vmatmul.mubr.f32.gmra.mrb[0].mxu0 %v210
    %v293 = vpop.f32.mrb[0].mxu0
    %v294 = vadd.f32 %v197, %v293
    %v295 = vpop.f32.mrb[0].mxu0
    %296 = vdwg.mxu0
    %v297 = vtanh.pop %v279
    %v298 = vtanh.pop %v284
    %v299 = vtanh.pop %v289
    %v300 = vtanh.pop %v294
    %v301 = vld [vmem:[%s5] sm:$0xff]
    %v302 = vld [vmem:[%s5 + $0x8] sm:$0xff]
    %v303 = vld [vmem:[%s5 + $0x10] sm:$0xff]
    %v304 = vld [vmem:[%s5 + $0x18] sm:$0xff]
    %v305 = vld [vmem:[%s6] sm:$0xff]
    %v306 = vld [vmem:[%s6 + $0x8] sm:$0xff]
    %v307 = vld [vmem:[%s6 + $0x10] sm:$0xff]
    %v308 = vld [vmem:[%s6 + $0x18] sm:$0xff]
    %310 = vset.pattern.permute.xlu0 0
    %311 = vperm.xlu0 %310, %v305
    %v312 = vpop.permute.xlu0 %311
    %315 = vset.pattern.permute.xlu0 0
    %316 = vperm.xlu0 %315, %v306
    %v317 = vpop.permute.xlu0 %316
    %320 = vset.pattern.permute.xlu0 0
    %321 = vperm.xlu0 %320, %v307
    %v322 = vpop.permute.xlu0 %321
    %325 = vset.pattern.permute.xlu0 0
    %326 = vperm.xlu0 %325, %v308
    %v327 = vpop.permute.xlu0 %326
    %v330 = vsel %vm199, %v301, 0
    %v333 = vsel %vm199, %v302, 0
    %v336 = vsel %vm199, %v303, 0
    %v339 = vsel %vm199, %v304, 0
    %341 = vmatprep.subr.mxu0 0.0
    %342 = vmatpush1.msra.mxu0 %v297
    %343 = vmatprep.subr.mxu0 0.0
    %344 = vmatpush1.msra.mxu0 %v298
    %345 = vmatprep.subr.mxu0 0.0
    %346 = vmatpush1.msra.mxu0 %v299
    %347 = vmatprep.subr.mxu0 0.0
    %348 = vmatpush1.msra.mxu0 %v300
    %349 = vmatprep.subr.mxu0 0.0
    %350 = vmatpush1.msra.mxu0 0.0
    %351 = vmatprep.subr.mxu0 0.0
    %352 = vmatpush1.msra.mxu0 0.0
    %353 = vmatprep.subr.mxu0 0.0
    %354 = vmatpush1.msra.mxu0 0.0
    %355 = vmatprep.subr.mxu0 0.0
    %356 = vmatpush1.msra.mxu0 0.0
    %357 = vmatprep.subr.mxu0 0.0
    %358 = vmatpush1.msra.mxu0 0.0
    %359 = vmatprep.subr.mxu0 0.0
    %360 = vmatpush1.msra.mxu0 0.0
    %361 = vmatprep.subr.mxu0 0.0
    %362 = vmatpush1.msra.mxu0 0.0
    %363 = vmatprep.subr.mxu0 0.0
    %364 = vmatpush1.msra.mxu0 0.0
    %365 = vmatprep.subr.mxu0 0.0
    %366 = vmatpush1.msra.mxu0 0.0
    %367 = vmatprep.subr.mxu0 0.0
    %368 = vmatpush1.msra.mxu0 0.0
    %369 = vmatprep.subr.mxu0 0.0
    %370 = vmatpush1.msra.mxu0 0.0
    %371 = vmatprep.subr.mxu0 0.0
    %372 = vmatpush1.msra.mxu0 0.0
    %373 = vmatprep.subr.mxu0 0.0
    %374 = vmatpush1.msra.mxu0 0.0
    %375 = vmatprep.subr.mxu0 0.0
    %376 = vmatpush1.msra.mxu0 0.0
    %377 = vmatprep.subr.mxu0 0.0
    %378 = vmatpush1.msra.mxu0 0.0
    %379 = vmatprep.subr.mxu0 0.0
    %380 = vmatpush1.msra.mxu0 0.0
    %381 = vmatprep.subr.mxu0 0.0
    %382 = vmatpush1.msra.mxu0 0.0
    %383 = vmatprep.subr.mxu0 0.0
    %384 = vmatpush1.msra.mxu0 0.0
    %385 = vmatprep.subr.mxu0 0.0
    %386 = vmatpush1.msra.mxu0 0.0
    %387 = vmatprep.subr.mxu0 0.0
    %388 = vmatpush1.msra.mxu0 0.0
    %389 = vmatprep.subr.mxu0 0.0
    %390 = vmatpush1.msra.mxu0 0.0
    %391 = vmatprep.subr.mxu0 0.0
    %392 = vmatpush1.msra.mxu0 0.0
    %393 = vmatprep.subr.mxu0 0.0
    %394 = vmatpush1.msra.mxu0 0.0
    %395 = vmatprep.subr.mxu0 0.0
    %396 = vmatpush1.msra.mxu0 0.0
    %397 = vmatprep.subr.mxu0 0.0
    %398 = vmatpush1.msra.mxu0 0.0
    %399 = vmatprep.subr.mxu0 0.0
    %400 = vmatpush1.msra.mxu0 0.0
    %401 = vmatprep.subr.mxu0 0.0
    %402 = vmatpush1.msra.mxu0 0.0
    %403 = vmatprep.subr.mxu0 0.0
    %404 = vmatpush1.msra.mxu0 0.0
    %405 = vmatprep.mubr.f32.mxu0 0.0
    %406 = vmatmul.mubr.f32.gmra.mrb[0].mxu0 %v330
    %v407 = vpop.f32.mrb[0].mxu0
    %v408 = vadd.f32 %v312, %v407
    %v409 = vpop.f32.mrb[0].mxu0
    %410 = vmatprep.mubr.f32.mxu0 0.0
    %411 = vmatmul.mubr.f32.gmra.mrb[0].mxu0 %v333
    %v412 = vpop.f32.mrb[0].mxu0
    %v413 = vadd.f32 %v317, %v412
    %v414 = vpop.f32.mrb[0].mxu0
    %415 = vmatprep.mubr.f32.mxu0 0.0
    %416 = vmatmul.mubr.f32.gmra.mrb[0].mxu0 %v336
    %v417 = vpop.f32.mrb[0].mxu0
    %v418 = vadd.f32 %v322, %v417
    %v419 = vpop.f32.mrb[0].mxu0
    %420 = vmatprep.mubr.f32.mxu0 0.0
    %421 = vmatmul.mubr.f32.gmra.mrb[0].mxu0 %v339
    %v422 = vpop.f32.mrb[0].mxu0
    %v423 = vadd.f32 %v327, %v422
    %v424 = vpop.f32.mrb[0].mxu0
    %425 = vdwg.mxu0
    %v426 = vtanh.pop %v408
    %v427 = vtanh.pop %v413
    %v428 = vtanh.pop %v418
    %v429 = vtanh.pop %v423
    %v430 = vld [vmem:[%s7] sm:$0x1]
    %v431 = vld [vmem:[#allocation2] sm:$0x1]
    %433 = vset.pattern.permute.xlu0 0
    %434 = vperm.xlu0 %433, %v431
    %v435 = vpop.permute.xlu0 %434
    %v437 = vlaneseq
    %v438 = vshrl.u32 %v437, 7
    %v439 = vsub.s32 0, %v438
    %v440 = vrot.slane %v435, %v439
    %v442 = vsel %vm199, %v430, 0
    %444 = vmatprep.subr.mxu0 0.0
    %445 = vmatpush1.msra.mxu0 %v426
    %446 = vmatprep.subr.mxu0 0.0
    %447 = vmatpush1.msra.mxu0 %v427
    %448 = vmatprep.subr.mxu0 0.0
    %449 = vmatpush1.msra.mxu0 %v428
    %450 = vmatprep.subr.mxu0 0.0
    %451 = vmatpush1.msra.mxu0 %v429
    %452 = vmatprep.subr.mxu0 0.0
    %453 = vmatpush1.msra.mxu0 0.0
    %454 = vmatprep.subr.mxu0 0.0
    %455 = vmatpush1.msra.mxu0 0.0
    %456 = vmatprep.subr.mxu0 0.0
    %457 = vmatpush1.msra.mxu0 0.0
    %458 = vmatprep.subr.mxu0 0.0
    %459 = vmatpush1.msra.mxu0 0.0
    %460 = vmatprep.subr.mxu0 0.0
    %461 = vmatpush1.msra.mxu0 0.0
    %462 = vmatprep.subr.mxu0 0.0
    %463 = vmatpush1.msra.mxu0 0.0
    %464 = vmatprep.subr.mxu0 0.0
    %465 = vmatpush1.msra.mxu0 0.0
    %466 = vmatprep.subr.mxu0 0.0
    %467 = vmatpush1.msra.mxu0 0.0
    %468 = vmatprep.subr.mxu0 0.0
    %469 = vmatpush1.msra.mxu0 0.0
    %470 = vmatprep.subr.mxu0 0.0
    %471 = vmatpush1.msra.mxu0 0.0
    %472 = vmatprep.subr.mxu0 0.0
    %473 = vmatpush1.msra.mxu0 0.0
    %474 = vmatprep.subr.mxu0 0.0
    %475 = vmatpush1.msra.mxu0 0.0
    %476 = vmatprep.subr.mxu0 0.0
    %477 = vmatpush1.msra.mxu0 0.0
    %478 = vmatprep.subr.mxu0 0.0
    %479 = vmatpush1.msra.mxu0 0.0
    %480 = vmatprep.subr.mxu0 0.0
    %481 = vmatpush1.msra.mxu0 0.0
    %482 = vmatprep.subr.mxu0 0.0
    %483 = vmatpush1.msra.mxu0 0.0
    %484 = vmatprep.subr.mxu0 0.0
    %485 = vmatpush1.msra.mxu0 0.0
    %486 = vmatprep.subr.mxu0 0.0
    %487 = vmatpush1.msra.mxu0 0.0
    %488 = vmatprep.subr.mxu0 0.0
    %489 = vmatpush1.msra.mxu0 0.0
    %490 = vmatprep.subr.mxu0 0.0
    %491 = vmatpush1.msra.mxu0 0.0
    %492 = vmatprep.subr.mxu0 0.0
    %493 = vmatpush1.msra.mxu0 0.0
    %494 = vmatprep.subr.mxu0 0.0
    %495 = vmatpush1.msra.mxu0 0.0
    %496 = vmatprep.subr.mxu0 0.0
    %497 = vmatpush1.msra.mxu0 0.0
    %498 = vmatprep.subr.mxu0 0.0
    %499 = vmatpush1.msra.mxu0 0.0
    %500 = vmatprep.subr.mxu0 0.0
    %501 = vmatpush1.msra.mxu0 0.0
    %502 = vmatprep.subr.mxu0 0.0
    %503 = vmatpush1.msra.mxu0 0.0
    %504 = vmatprep.subr.mxu0 0.0
    %505 = vmatpush1.msra.mxu0 0.0
    %506 = vmatprep.subr.mxu0 0.0
    %507 = vmatpush1.msra.mxu0 0.0
    %508 = vmatprep.mubr.f32.mxu0 0.0
    %509 = vmatmul.mubr.f32.gmra.mrb[0].mxu0 %v442
    %v510 = vpop.f32.mrb[0].mxu0
    %v511 = vadd.f32 %v440, %v510
    %v512 = vpop.f32.mrb[0].mxu0
    %513 = vdwg.mxu0
    %514 = vst [vmem:[#allocation3] sm:$0x1] %v511
    // Predicated region
    $region38: #{tpu_custom_call.1} parent=1 // pred_check
      _
    $region39: #{tpu_custom_call.1} parent=1 // pred_check_branch
      %516 = sbr.rel (0) target = $region41
    $region40: #{tpu_custom_call.1} parent=1 // pred_region
      %s518 = ssub.s32 16, 16
      %519 = vsyncadd [#allocation4], %s518
      %s521 = sshll.u32 [#allocation3], 4
      %s522 = int_to_ptr.vmem [resolvable:$true] %s521
      %524 = dma.vmem_to_hbm [thread:$0]  %s522, 16, %s9, [#allocation4]
    $region41: #{tpu_custom_call.1} parent=1 // pred_fallthru
      _
    // Predicated region
    $region42: #{tpu_custom_call.1} parent=1 // pred_check
      _
    $region43: #{tpu_custom_call.1} parent=1 // pred_check_branch
      %526 = sbr.rel (0) target = $region45
    $region44: #{tpu_custom_call.1} parent=1 // pred_region
      %527 = dma.done [#allocation4], 16
    $region45: #{tpu_custom_call.1} parent=1 // pred_fallthru
      _
    %528 = vsyncpa [#allocation4], 1

</llo_original>
